<compile_context>
chip_gen: v5e
topology: v5e:2x2
jax: 0.10.0
libtpu: 0.0.40
codegen_flags: <defaults>
</compile_context>

<pallas_src>
import functools
import math

import jax
import jax.numpy as jnp
from jax.experimental import pallas as pl
from jax.experimental.pallas import tpu as pltpu


def _round_up(x: int, m: int) -> int:
    return ((x + m - 1) // m) * m


def _latent_encoder_kernel(x_ref, w_ref, b_ref, o_ref, *, compute_dtype):
    # x_ref: (bt, nt_blk, D)   VMEM (leading nt_blk tokens of bt batches)
    # w_ref: (D, L)            VMEM (grid-invariant -> fetched once, resident)
    # b_ref: (1, L)            VMEM (grid-invariant)
    # o_ref: (bt, nt_blk, L)   VMEM (full tile, no masked in-kernel slice)
    bt, nt_blk, d = x_ref.shape
    l = w_ref.shape[1]

    # Collapse (batch, token) -> M and run one MXU matmul per grid step with
    # compute-dtype (bf16) operands and an f32 accumulator.
    x = x_ref[...].reshape(bt * nt_blk, d).astype(compute_dtype)
    y = jnp.dot(x, w_ref[...], preferred_element_type=jnp.float32)
    y = y + b_ref[...].astype(jnp.float32)      # f32 epilogue (v5e-safe)
    y = jnp.tanh(y)

    # Store the full sublane-dense tile; [:, :n_tokens] happens in the wrapper.
    o_ref[...] = y.reshape(bt, nt_blk, l).astype(o_ref.dtype)


def latent_encoder_n_tokens(encoding, weight, bias, n_tokens, *,
                            compute_dtype=jnp.bfloat16,
                            target_rows=2048,
                            vmem_budget_bytes=24 << 20):
    """encoding: (B, S, D); weight: (D, L); bias: (L,) -> (B, n_tokens * L)."""
    B, S, D = encoding.shape
    L = weight.shape[1]
    assert weight.shape[0] == D and bias.shape == (L,)
    assert 0 < n_tokens <= S

    compute_dtype = jnp.dtype(compute_dtype)
    out_dtype = encoding.dtype

    # Tokens read per batch: n_tokens rounded up to the sublane pack of the
    # compute dtype (16 for bf16, 8 for f32), clamped to the full seq length
    # (a block dim equal to the array dim is always legal).
    pack = 8 if compute_dtype.itemsize >= 4 else 16
    nt_blk = min(S, _round_up(n_tokens, pack))
    # TODO(synk): for tiny n_tokens << pack with very large D, a manual
    # memory_space=pl.ANY gather of exact (n_tokens, D) slabs would remove the
    # token overread; not worth the complexity at these shapes.

    in_item = encoding.dtype.itemsize
    cd_item = compute_dtype.itemsize
    out_item = jnp.dtype(out_dtype).itemsize

    # VMEM budget per grid step: double-buffered input & output tiles,
    # (conservatively) double-buffered grid-invariant weight, plus in-kernel
    # intermediates (bf16 cast of x, f32 y before/after tanh).
    per_batch = nt_blk * (2 * D * in_item + D * cd_item
                          + 2 * L * out_item + 2 * L * 4)
    fixed = 2 * D * L * cd_item + 2 * L * 4
    bt_budget = max(1, (vmem_budget_bytes - fixed) // max(1, per_batch))

    # ~target_rows rows per tile amortizes the ~0.35us/step overhead and fills
    # the MXU M dimension; cap at ceil(B/2) so v7x's two TensorCores both get
    # work (harmless on single-TC v5e/v6e).
    bt = max(1, min(B, target_rows // max(1, nt_blk), bt_budget))
    if B >= 2:
        bt = min(bt, pl.cdiv(B, 2))
    grid = (pl.cdiv(B, bt),)

    w_c = weight.astype(compute_dtype)              # tiny one-time cast
    b2 = bias.astype(jnp.float32).reshape(1, L)

    cost = pl.CostEstimate(
        flops=2 * B * nt_blk * D * L,
        transcendentals=B * nt_blk * L,
        bytes_accessed=(B * nt_blk * D * in_item + D * L * cd_item
                        + L * 4 + B * nt_blk * L * out_item),
    )

    kernel = functools.partial(_latent_encoder_kernel,
                               compute_dtype=compute_dtype)

    out = pl.pallas_call(
        kernel,
        out_shape=jax.ShapeDtypeStruct((B, nt_blk, L), out_dtype),
        grid_spec=pltpu.PrefetchScalarGridSpec(
            num_scalar_prefetch=0,
            grid=grid,
            in_specs=[
                # Reads only the first nt_blk tokens of each batch block,
                # directly from the full (B, S, D) HBM array (no XLA pre-slice).
                pl.BlockSpec((bt, nt_blk, D), lambda i: (i, 0, 0)),
                # Grid-invariant weight / bias: constant index_map => fetched
                # once, kept resident across grid steps.
                pl.BlockSpec((D, L), lambda i: (0, 0)),
                pl.BlockSpec((1, L), lambda i: (0, 0)),
            ],
            out_specs=pl.BlockSpec((bt, nt_blk, L), lambda i: (i, 0, 0)),
        ),
        compiler_params=pltpu.CompilerParams(
            dimension_semantics=("parallel",),
            vmem_limit_bytes=int(min(vmem_budget_bytes + (8 << 20), 112 << 20)),
        ),
        cost_estimate=cost,
    )(encoding, w_c, b2)

    # [:, :n_tokens, :].view(B, -1): drop padded token rows (if any) and
    # flatten -- cheap XLA ops on a contiguous layout.
    if nt_blk != n_tokens:
        out = out[:, :n_tokens, :]
    return out.reshape(B, n_tokens * L)


if __name__ == "__main__":
    # Config consistent with the module:
    #   config.transformer.d_model = 32
    #   config.latent_token_dim    = 16
    #   config.n_latent_tokens     = 4
    batch, seq, d_model, latent_dim, n_tokens = 2, 8, 32, 16, 4

    key = jax.random.PRNGKey(0)
    k_x, k_w, k_b = jax.random.split(key, 3)

    # Deterministic parameter init (mimics nn.Linear's U(-1/sqrt(fan_in), ...)).
    bound = 1.0 / math.sqrt(d_model)
    weight = jax.random.uniform(k_w, (d_model, latent_dim), jnp.float32,
                                minval=-bound, maxval=bound)
    bias = jax.random.uniform(k_b, (latent_dim,), jnp.float32,
                              minval=-bound, maxval=bound)
    encoding = jax.random.normal(k_x, (batch, seq, d_model), jnp.float32)

    def ref_fwd(x):
        return jnp.tanh(x @ weight + bias)[:, :n_tokens, :].reshape(
            x.shape[0], -1)

    # 1) Exact-precision path (f32 compute): tight tolerance vs f32 reference.
    out_f32 = jax.block_until_ready(
        latent_encoder_n_tokens(encoding, weight, bias, n_tokens,
                                compute_dtype=jnp.float32))
    assert out_f32.shape == (batch, n_tokens * latent_dim), out_f32.shape
    assert jnp.allclose(out_f32, ref_fwd(encoding), atol=1e-5, rtol=1e-5), \
        "mismatch vs reference (f32 compute path)"

    # 2) Default fast path (bf16 MXU operands, f32 accumulate + epilogue).
    #    Looser tolerance is the expected bf16 precision change, not a bug.
    out_bf16 = jax.block_until_ready(
        latent_encoder_n_tokens(encoding, weight, bias, n_tokens))
    assert out_bf16.shape == (batch, n_tokens * latent_dim), out_bf16.shape
    assert jnp.allclose(out_bf16, ref_fwd(encoding), atol=5e-2, rtol=5e-2), \
        "mismatch vs reference (bf16 compute path)"

    # 3) Ragged grid: B % bt != 0 exercises the padded partial last block
    #    (B=3 -> bt=2, grid=2, last block half out-of-bounds, output masked).
    enc3 = jax.random.normal(jax.random.PRNGKey(1), (3, seq, d_model),
                             jnp.float32)
    out3 = jax.block_until_ready(
        latent_encoder_n_tokens(enc3, weight, bias, n_tokens,
                                compute_dtype=jnp.float32))
    assert jnp.allclose(out3, ref_fwd(enc3), atol=1e-5, rtol=1e-5), \
        "mismatch vs reference (ragged grid / partial last block)"

    print("KERNEL_OK")
</pallas_src>

<mosaic_0001>
module attributes {stable_mosaic.version = 11 : i64} {
  func.func @_latent_encoder_kernel(%arg0: i32, %arg1: memref<1x8x32xf32, #tpu.memory_space<vmem>>, %arg2: memref<32x16xf32, #tpu.memory_space<vmem>>, %arg3: memref<1x16xf32, #tpu.memory_space<vmem>>, %arg4: memref<1x8x16xf32, #tpu.memory_space<vmem>>) attributes {dimension_semantics = [#tpu.dimension_semantics<parallel>], iteration_bounds = array<i64: 2>, scalar_prefetch = 0 : i64, scratch_operands = 0 : i64, tpu.core_type = #tpu.core_type<tc>, window_params = [{transform_indices = @transform_0, window_bounds = array<i64: 1, 8, 32>}, {pipeline_mode = #tpu.pipeline_mode<synchronous>, transform_indices = @transform_1, window_bounds = array<i64: 32, 16>}, {pipeline_mode = #tpu.pipeline_mode<synchronous>, transform_indices = @transform_2, window_bounds = array<i64: 1, 16>}, {transform_indices = @transform_3, window_bounds = array<i64: 1, 8, 16>}]} {
    %c0 = arith.constant 0 : index
    %c0_0 = arith.constant 0 : index
    %c0_1 = arith.constant 0 : index
    %0 = vector.load %arg1[%c0, %c0_0, %c0_1] : memref<1x8x32xf32, #tpu.memory_space<vmem>>, vector<1x8x32xf32>
    %1 = vector.shape_cast %0 : vector<1x8x32xf32> to vector<8x32xf32>
    %c0_2 = arith.constant 0 : index
    %c0_3 = arith.constant 0 : index
    %2 = vector.load %arg2[%c0_2, %c0_3] : memref<32x16xf32, #tpu.memory_space<vmem>>, vector<32x16xf32>
    %cst = arith.constant dense<0.000000e+00> : vector<8x16xf32>
    %3 = tpu.matmul %1, %2, %cst {dimension_numbers = #tpu.dot_dimension_numbers<[1], [0], [0], [1], [0, 0, 1, 1], [], []>} : vector<8x32xf32>, vector<32x16xf32>, vector<8x16xf32> -> vector<8x16xf32>
    %c0_4 = arith.constant 0 : index
    %c0_5 = arith.constant 0 : index
    %4 = vector.load %arg3[%c0_4, %c0_5] : memref<1x16xf32, #tpu.memory_space<vmem>>, vector<1x16xf32>
    %5 = vector.broadcast %4 : vector<1x16xf32> to vector<8x16xf32>
    %6 = arith.addf %3, %5 : vector<8x16xf32>
    %7 = math.tanh %6 : vector<8x16xf32>
    %8 = vector.shape_cast %7 : vector<8x16xf32> to vector<1x8x16xf32>
    %c0_6 = arith.constant 0 : index
    %c0_7 = arith.constant 0 : index
    %c0_8 = arith.constant 0 : index
    %9 = vector.load %arg4[%c0_6, %c0_7, %c0_8] : memref<1x8x16xf32, #tpu.memory_space<vmem>>, vector<1x8x16xf32>
    tpu.vector_store %arg4[%c0_6, %c0_7, %c0_8], %8 {strides = array<i32>} : memref<1x8x16xf32, #tpu.memory_space<vmem>>, vector<1x8x16xf32>,
    return
  }
  func.func @transform_0(%arg0: i32) -> (i32, i32, i32) {
    %c0_i32 = arith.constant 0 : i32
    %c0_i32_0 = arith.constant 0 : i32
    %c0_i32_1 = arith.constant 0 : i32
    return %arg0, %c0_i32, %c0_i32_0 : i32, i32, i32
  }
  func.func @transform_1(%arg0: i32) -> (i32, i32) {
    %c0_i32 = arith.constant 0 : i32
    %c0_i32_0 = arith.constant 0 : i32
    %c0_i32_1 = arith.constant 0 : i32
    return %c0_i32, %c0_i32_0 : i32, i32
  }
  func.func @transform_2(%arg0: i32) -> (i32, i32) {
    %c0_i32 = arith.constant 0 : i32
    %c0_i32_0 = arith.constant 0 : i32
    %c0_i32_1 = arith.constant 0 : i32
    return %c0_i32, %c0_i32_0 : i32, i32
  }
  func.func @transform_3(%arg0: i32) -> (i32, i32, i32) {
    %c0_i32 = arith.constant 0 : i32
    %c0_i32_0 = arith.constant 0 : i32
    %c0_i32_1 = arith.constant 0 : i32
    return %arg0, %c0_i32, %c0_i32_0 : i32, i32, i32
  }
}

</mosaic_0001>

<llo_original>
// kernel: tpu_custom_call.1
$region0: #{tpu_custom_call.1}
  #allocation0 [shape = 'u32[]', space=smem, size = 0x4, offset = 0x4, fixed_abs, tag = 'smem constant byte address 0x4 - core index']
  #allocation1 [shape = 'u32[72,128]{1,0:T(1,128)}', space=vmem, size = 0x9000, scoped, tag = 'internal scratch']
  %s0 = inlined_call_operand.vmem [shape: f32[2,8,32], index: 0, kind: input, shape index: {}]
  %s1 = inlined_call_operand.vmem [shape: f32[32,16], index: 1, kind: input, shape index: {}]
  %s2 = inlined_call_operand.vmem [shape: f32[1,16], index: 2, kind: input, shape index: {}]
  %s3 = inlined_call_operand.hbm [shape: f32[2,8,16], index: 3, kind: output, shape index: {}]
  %s4 = sld [smem:[#allocation0]]
  $region45: #{tpu_custom_call.1} parent=0
    _
  %s6 = ssub.s32 1, %s4
  %s7 = scalar_select 0, %s6, %s4
  $region1: #{tpu_custom_call.1} parent=0
    #allocation2 [shape = 'u8[8192]{0}', space=vmem, size = 0x2000, scoped, tag = 'output window, operand 0']
    #allocation3 [shape = 's32[2]{0}', space=sflag, size = 0x8, scoped, tag = 'scoped memory for tpu_custom_call.1']
    %8 = vsyncpa [#allocation3], 0
    %s9 = scalar_lea.sflag [#allocation3], 1
    %10 = vsyncpa %s9, 0
    loop: start=0, step=1, limit=4
    $region2: #{tpu_custom_call.1} parent=1 // loop_pre_header
      _
    $region3: #{tpu_custom_call.1} parent=1 // loop_header
      %s12 = sphi 0, %s16
      %p13 = scmp.ge.s32.totalorder %s12, 4
      %s22 = sphi 0, %s24
      %s25 = sphi 0, %s22
      %s26 = sphi 0, %s25
      %s42 = sphi 0, %s26
      %s46 = sphi 0, %s46
      %s48 = sphi 0, %s46
      %s49 = sphi 0, %s48
      %s63 = sphi 0, %s49
      %s67 = sphi 0, %s67
      %s69 = sphi 0, %s67
      %s70 = sphi 0, %s69
      %s84 = sphi 0, %s70
      %s90 = sphi 0, %s92
      %s93 = sphi 0, %s90
      %s94 = sphi 0, %s93
      %s110 = sphi 0, %s94
    $region4: #{tpu_custom_call.1} parent=1 // loop_header_branch
      %15 = sbr.rel (%p13) target = $region8
    $region5: #{tpu_custom_call.1} parent=1 // loop_body
      %s17 = ssub.s32 %s12, 1
      %s18 = ssub.s32 %s12, 2
      %s19 = sadd.s32 %s12, 1
      %s20 = ssub.s32 %s12, %s19
      %p21 = scmp.eq.s32.totalorder %s20, 0
      %s23 = sadd.s32 %s22, 1
      %s24 = scalar_select %p21, %s22, %s23
      %p27 = pneg %p21
      %p28 = scmp.eq.s32.totalorder %s12, 1
      %p29 = por %p27, %p28
      %p30 = scmp.ne.s32.totalorder %s22, %s25
      %p31 = scmp.eq.s32.totalorder %s12, 0
      %p32 = por %p30, %p31
      %p33 = scmp.ne.s32.totalorder %s22, %s25
      %p34 = scmp.eq.s32.totalorder %s17, 1
      %p35 = por %p33, %p34
      %p36 = scmp.ne.s32.totalorder %s25, %s26
      %p37 = scmp.eq.s32.totalorder %s17, 0
      %p38 = por %p36, %p37
      %p39 = scmp.ne.s32.totalorder %s25, %s26
      %p40 = scmp.eq.s32.totalorder %s18, 1
      %p41 = por %p39, %p40
      %p43 = scmp.ne.s32.totalorder %s26, %s42
      %p44 = scmp.eq.s32.totalorder %s18, 0
      %p45 = por %p43, %p44
      %s47 = sadd.s32 %s46, 1
      %p50 = scmp.eq.s32.totalorder %s12, 1
      %p51 = scmp.ne.s32.totalorder %s46, %s48
      %p52 = scmp.eq.s32.totalorder %s12, 0
      %p53 = por %p51, %p52
      %p54 = scmp.ne.s32.totalorder %s46, %s48
      %p55 = scmp.eq.s32.totalorder %s17, 1
      %p56 = por %p54, %p55
      %p57 = scmp.ne.s32.totalorder %s48, %s49
      %p58 = scmp.eq.s32.totalorder %s17, 0
      %p59 = por %p57, %p58
      %p60 = scmp.ne.s32.totalorder %s48, %s49
      %p61 = scmp.eq.s32.totalorder %s18, 1
      %p62 = por %p60, %p61
      %p64 = scmp.ne.s32.totalorder %s49, %s63
      %p65 = scmp.eq.s32.totalorder %s18, 0
      %p66 = por %p64, %p65
      %s68 = sadd.s32 %s67, 1
      %p71 = scmp.eq.s32.totalorder %s12, 1
      %p72 = scmp.ne.s32.totalorder %s67, %s69
      %p73 = scmp.eq.s32.totalorder %s12, 0
      %p74 = por %p72, %p73
      %p75 = scmp.ne.s32.totalorder %s67, %s69
      %p76 = scmp.eq.s32.totalorder %s17, 1
      %p77 = por %p75, %p76
      %p78 = scmp.ne.s32.totalorder %s69, %s70
      %p79 = scmp.eq.s32.totalorder %s17, 0
      %p80 = por %p78, %p79
      %p81 = scmp.ne.s32.totalorder %s69, %s70
      %p82 = scmp.eq.s32.totalorder %s18, 1
      %p83 = por %p81, %p82
      %p85 = scmp.ne.s32.totalorder %s70, %s84
      %p86 = scmp.eq.s32.totalorder %s18, 0
      %p87 = por %p85, %p86
      %s88 = ssub.s32 %s12, %s19
      %p89 = scmp.eq.s32.totalorder %s88, 0
      %s91 = sadd.s32 %s90, 1
      %s92 = scalar_select %p89, %s90, %s91
      %p95 = pneg %p89
      %p96 = scmp.eq.s32.totalorder %s12, 1
      %p97 = por %p95, %p96
      %p98 = scmp.ne.s32.totalorder %s90, %s93
      %p99 = scmp.eq.s32.totalorder %s12, 0
      %p100 = por %p98, %p99
      %p101 = scmp.ne.s32.totalorder %s90, %s93
      %p102 = scmp.eq.s32.totalorder %s17, 1
      %p103 = por %p101, %p102
      %p104 = scmp.ne.s32.totalorder %s93, %s94
      %p105 = scmp.eq.s32.totalorder %s17, 0
      %p106 = por %p104, %p105
      %p107 = scmp.ne.s32.totalorder %s93, %s94
      %p108 = scmp.eq.s32.totalorder %s18, 1
      %p109 = por %p107, %p108
      %p111 = scmp.ne.s32.totalorder %s94, %s110
      %p112 = scmp.eq.s32.totalorder %s18, 0
      %p113 = por %p111, %p112
      %p114 = scmp.le.s32.totalorder 1, %s12
      %p115 = scmp.lt.s32.totalorder %s12, 3
      %p116 = pnand %p114, %p115
      %p117 = pneg %p116
      // Predicated region
      $region9: #{tpu_custom_call.1} parent=5 // pred_check
        _
      $region10: #{tpu_custom_call.1} parent=5 // pred_check_branch
        %119 = sbr.rel (%p116) target = $region12
      $region11: #{tpu_custom_call.1} parent=5 // pred_region
        %s120 = ssub.s32 %s12, 1
        // Predicated region
        $region13: #{tpu_custom_call.1} parent=11 // pred_check
          %p121 = pneg %p59
        $region14: #{tpu_custom_call.1} parent=11 // pred_check_branch
          %123 = sbr.rel (%p121) target = $region16
        $region15: #{tpu_custom_call.1} parent=11 // pred_region
          _
        $region16: #{tpu_custom_call.1} parent=11 // pred_fallthru
          _
        // Predicated region
        $region17: #{tpu_custom_call.1} parent=11 // pred_check
          %p124 = pneg %p80
        $region18: #{tpu_custom_call.1} parent=11 // pred_check_branch
          %126 = sbr.rel (%p124) target = $region20
        $region19: #{tpu_custom_call.1} parent=11 // pred_region
          _
        $region20: #{tpu_custom_call.1} parent=11 // pred_fallthru
          _
      $region12: #{tpu_custom_call.1} parent=5 // pred_fallthru
        _
      %p127 = scmp.lt.s32.totalorder %s12, 2
      // Predicated region
      $region21: #{tpu_custom_call.1} parent=5 // pred_check
        %p128 = pneg %p127
      $region22: #{tpu_custom_call.1} parent=5 // pred_check_branch
        %130 = sbr.rel (%p128) target = $region24
      $region23: #{tpu_custom_call.1} parent=5 // pred_region
        // Predicated region
        $region25: #{tpu_custom_call.1} parent=23 // pred_check
          %p131 = pneg %p32
        $region26: #{tpu_custom_call.1} parent=23 // pred_check_branch
          %133 = sbr.rel (%p131) target = $region28
        $region27: #{tpu_custom_call.1} parent=23 // pred_region
          %p134 = scmp.lt.s32.totalorder %s12, 1
          %s135 = scalar_select %p134, %s12, 1
          %s136 = smul.addr %s135, 8
          %s137 = scalar_lea.vmem %s0, %s136
        $region28: #{tpu_custom_call.1} parent=23 // pred_fallthru
          _
      $region24: #{tpu_custom_call.1} parent=5 // pred_fallthru
        _
      %p138 = scmp.le.s32.totalorder 1, %s12
      %p139 = scmp.lt.s32.totalorder %s12, 3
      %p140 = pnand %p138, %p139
      %p141 = pneg %p140
      // Predicated region
      $region29: #{tpu_custom_call.1} parent=5 // pred_check
        _
      $region30: #{tpu_custom_call.1} parent=5 // pred_check_branch
        %143 = sbr.rel (%p140) target = $region32
      $region31: #{tpu_custom_call.1} parent=5 // pred_region
        %s144 = ssub.s32 %s12, 1
        %p145 = scmp.lt.s32.totalorder %s17, 1
        %s146 = scalar_select %p145, %s17, 1
        %s147 = smul.addr %s146, 8
        %s148 = scalar_lea.vmem %s0, %s147
        %p149 = pneg %p38
        %p150 = pneg %p35
        %p151 = pneg %p59
        %p152 = pneg %p56
        %p153 = pneg %p80
        %p154 = pneg %p77
        %p155 = pneg %p106
        %p156 = pneg %p103
        %s157 = sand.u32 %s93, 1
        %s158 = scalar_lea.sflag [#allocation3], %s157
        %s159 = sand.u32 %s93, 1
        %s160 = smul.addr %s159, 8
        %s161 = scalar_lea.vmem [#allocation2], %s160
        %p162 = scmp.lt.s32.totalorder %s17, 1
        %s163 = scalar_select %p162, %s17, 1
        %s164 = smul.addr %s163, 8
        %s165 = scalar_lea.vmem %s0, %s164
        %v166 = vld [vmem:[%s165] sm:$0xff]
        %v167 = vld [vmem:[%s1] sm:$0xff]
        %v168 = vld [vmem:[%s1 + $0x8] sm:$0xff]
        %v169 = vld [vmem:[%s1 + $0x10] sm:$0xff]
        %v170 = vld [vmem:[%s1 + $0x18] sm:$0xff]
        %v171 = vld [vmem:[%s2] sm:$0x1]
        %v173 = vperm.slane %v171, 0
        %vm175 = vcmask 261120
        %v177 = vsel %vm175, %v166, 0
        %179 = vmatpush.msra.mxu0 0.0
        %180 = vmatpush.msra.mxu0 0.0
        %181 = vmatpush.msra.mxu0 0.0
        %182 = vmatpush.msra.mxu0 0.0
        %183 = vmatpush.msra.mxu0 0.0
        %184 = vmatpush.msra.mxu0 0.0
        %185 = vmatpush.msra.mxu0 0.0
        %186 = vmatpush.msra.mxu0 0.0
        %187 = vmatpush.msra.mxu0 0.0
        %188 = vmatpush.msra.mxu0 0.0
        %189 = vmatpush.msra.mxu0 0.0
        %190 = vmatpush.msra.mxu0 0.0
        %191 = vmatpush.msra.mxu0 %v170
        %192 = vmatpush.msra.mxu0 %v169
        %193 = vmatpush.msra.mxu0 %v168
        %194 = vmatpush.msra.mxu0 %v167
        %195 = vmatmul.f32.gmra.mxu0 %v177
        %v196 = vpop.f32.mrf.mxu0
        %v197 = vadd.f32 %v173, %v196
        %198 = vdwg.mxu0
        %v199 = vtanh.pop %v197
        %vm200 = vcmask 130048
        %201 = vst.msk [vmem:[%s161] sm:$0xff] %vm200, %v199
        %s202 = sand.u32 %s93, 1
        %s203 = scalar_lea.sflag [#allocation3], %s202
        %s204 = sand.u32 %s93, 1
        %s205 = smul.addr %s204, 8
        %s206 = scalar_lea.vmem [#allocation2], %s205
        // Predicated region
        $region33: #{tpu_custom_call.1} parent=31 // pred_check
          %p207 = pneg %p103
        $region34: #{tpu_custom_call.1} parent=31 // pred_check_branch
          %209 = sbr.rel (%p207) target = $region36
        $region35: #{tpu_custom_call.1} parent=31 // pred_region
          %211 = vsyncadd %s203, 0
          %s212 = smul.addr %s17, 8
          %s213 = scalar_lea.hbm %s3, %s212
          %s215 = sshll.u32 %s206, 4
          %s216 = int_to_ptr.vmem [resolvable:$true] %s215
          %s217 = sshll.u32 %s213, 4
          %s218 = int_to_ptr.hbm [resolvable:$true] %s217
          %220 = dma.vmem_to_hbm [thread:$0]  %s216, 128, %s218, %s203
        $region36: #{tpu_custom_call.1} parent=31 // pred_fallthru
          _
      $region32: #{tpu_custom_call.1} parent=5 // pred_fallthru
        _
      %p221 = scmp.le.s32.totalorder 2, %s12
      // Predicated region
      $region37: #{tpu_custom_call.1} parent=5 // pred_check
        %p222 = pneg %p221
      $region38: #{tpu_custom_call.1} parent=5 // pred_check_branch
        %224 = sbr.rel (%p222) target = $region40
      $region39: #{tpu_custom_call.1} parent=5 // pred_region
        %s225 = ssub.s32 %s12, 2
        // Predicated region
        $region41: #{tpu_custom_call.1} parent=39 // pred_check
          %p226 = pneg %p109
        $region42: #{tpu_custom_call.1} parent=39 // pred_check_branch
          %228 = sbr.rel (%p226) target = $region44
        $region43: #{tpu_custom_call.1} parent=39 // pred_region
          %s229 = sand.u32 %s94, 1
          %s230 = scalar_lea.sflag [#allocation3], %s229
          %s231 = sand.u32 %s94, 1
          %s232 = smul.addr %s231, 8
          %s233 = scalar_lea.vmem [#allocation2], %s232
          %235 = dma.done %s230, 128
        $region44: #{tpu_custom_call.1} parent=39 // pred_fallthru
          _
      $region40: #{tpu_custom_call.1} parent=5 // pred_fallthru
        _
    $region6: #{tpu_custom_call.1} parent=1 // loop_footer
      %s16 = sadd.s32 1, %s12
    $region7: #{tpu_custom_call.1} parent=1 // loop_footer_branch
      %11 = sbr.rel target = $region3
    $region8: #{tpu_custom_call.1} parent=1 // loop_exit
      _
    %236 = vsyncpa [#allocation3], 1
    %s237 = scalar_lea.sflag [#allocation3], 1
    %238 = vsyncpa %s237, 1

</llo_original>
